<compile_context>
chip_gen: v5e
topology: v5e:2x2
jax: 0.10.0
libtpu: 0.0.40
codegen_flags: <defaults>
</compile_context>

<pallas_src>
import jax
import jax.numpy as jnp
from jax.experimental import pallas as pl
from jax.experimental.pallas import tpu as pltpu

LANES = 128
SUBLANES = 8  # f32 vreg sublane count


def _fold_sublanes(e):
    """VPU pre-fold of tile-aligned sublane halves before the XLU cross-lane sum."""
    rows = e.shape[0]
    while rows > SUBLANES and (rows // 2) % SUBLANES == 0:
        half = rows // 2
        e = e[:half, :] + e[half:, :]
        rows = half
    return e


def _objective_terms(rho, x, pv, pu, img):
    # ubar = pu / rho ; xbar = pv - ubar
    xbar = pv - pu / rho
    d1 = x - img
    d2 = x - xbar
    # Fuse both squared-error terms so only ONE cross-lane reduction is needed.
    e = d1 * d1 + rho * (d2 * d2)
    return _fold_sublanes(e)


# ---------------------------------------------------------------------------
# Single-problem kernel: one invocation, no grid, slab fully resident in VMEM.
# ---------------------------------------------------------------------------
def _objective_kernel(rho_ref, buf_ref, o_ref):
    rho = rho_ref[0, 0]                       # runtime rho from SMEM (one sld)
    e = _objective_terms(rho, buf_ref[0], buf_ref[1], buf_ref[2], buf_ref[3])
    o_ref[0, 0] = 0.5 * jnp.sum(e)            # scalar result straight to SMEM


def objective_x(x, pv, pu, img, lmbda=100.0):
    """Pallas TPU implementation of ObjectiveX.forward. Returns a float32 scalar."""
    rho = (jnp.float32(1.0) / jnp.asarray(lmbda, dtype=jnp.float32)).reshape(1, 1)

    total = x.size
    assert total % (LANES * SUBLANES) == 0, "element count must tile to (8k, 128)"
    rows = total // LANES

    def flat(a):
        return a.astype(jnp.float32).reshape(rows, LANES)

    # One contiguous (4, rows, 128) slab -> a single input DMA instead of four.
    # TODO(synk): in the full ADMM loop, store x/pv/pu/img as this slab at the
    # producer (or fuse the objective into the x-update kernel) so this stack
    # disappears from the per-call path.
    slab = jnp.stack([flat(x), flat(pv), flat(pu), flat(img)], axis=0)

    out = pl.pallas_call(
        _objective_kernel,
        out_shape=jax.ShapeDtypeStruct((1, 1), jnp.float32),
        in_specs=[
            pl.BlockSpec(memory_space=pltpu.MemorySpace.SMEM),   # rho scalar
            pl.BlockSpec(memory_space=pltpu.MemorySpace.VMEM),   # packed slab
        ],
        out_specs=pl.BlockSpec(memory_space=pltpu.MemorySpace.SMEM),
        cost_estimate=pl.CostEstimate(
            flops=10 * total, transcendentals=0,
            bytes_accessed=4 * total * 4 + 8),
    )(rho, slab)
    return out[0, 0]


# ---------------------------------------------------------------------------
# Batched kernel: B independent problems per call, grid over B ("parallel").
# ---------------------------------------------------------------------------
def _make_batched_kernel(rho):
    rho = float(rho)  # single compile per lmbda here; runtime-rho path is above

    def kernel(buf_ref, o_ref):
        # buf_ref block: (1, 4, rows, LANES) -- one problem's packed slab.
        e = _objective_terms(rho, buf_ref[0, 0], buf_ref[0, 1],
                             buf_ref[0, 2], buf_ref[0, 3])
        s = 0.5 * jnp.sum(e)
        # Full (8,128) lane-dense output tile -> unmasked stores; wrapper
        # reads element [b, 0, 0].
        o_ref[...] = jnp.full((1, SUBLANES, LANES), s, dtype=jnp.float32)

    return kernel


def objective_x_batched(x, pv, pu, img, lmbda=100.0):
    """Per-problem objective for a batch of B independent (N,C,H,W) problems.

    Amortizes the fixed pallas_call dispatch cost: one call, a 'parallel'
    leading grid axis (shards across v7x's two TensorCores when B >= 2 per
    core), one slab DMA per problem, per-block partial sums reduced/read in
    the wrapper.
    """
    rho = 1.0 / float(lmbda)
    B = x.shape[0]
    per = x[0].size
    assert per % (LANES * SUBLANES) == 0, "per-problem size must tile to (8k, 128)"
    rows = per // LANES

    def flat(a):
        return a.astype(jnp.float32).reshape(B, 1, rows, LANES)

    slab = jnp.concatenate([flat(x), flat(pv), flat(pu), flat(img)], axis=1)

    out = pl.pallas_call(
        _make_batched_kernel(rho),
        out_shape=jax.ShapeDtypeStruct((B, SUBLANES, LANES), jnp.float32),
        grid=(B,),
        in_specs=[pl.BlockSpec((1, 4, rows, LANES), lambda b: (b, 0, 0, 0))],
        out_specs=pl.BlockSpec((1, SUBLANES, LANES), lambda b: (b, 0, 0)),
        compiler_params=pltpu.CompilerParams(
            dimension_semantics=("parallel",)),
        cost_estimate=pl.CostEstimate(
            flops=10 * per * B, transcendentals=0,
            bytes_accessed=4 * per * 4 * B + B * SUBLANES * LANES * 4),
    )(slab)
    return out[:, 0, 0]


# ---------------------------------------------------------------------------
# Pure-JAX reference (mirrors the PyTorch module).
# ---------------------------------------------------------------------------
def objective_x_ref(x, pv, pu, img, lmbda=100.0):
    rho = 1.0 / lmbda
    ubar = pu / rho
    xbar = pv - ubar
    return 0.5 * jnp.sum((x - img) ** 2) + rho / 2.0 * jnp.sum((x - xbar) ** 2)


if __name__ == "__main__":
    key = jax.random.PRNGKey(0)
    k1, k2, k3, k4 = jax.random.split(key, 4)

    shape = (2, 4, 16, 16)  # (N, C, H, W)
    x = jax.random.normal(k1, shape, dtype=jnp.float32)
    pv = jax.random.normal(k2, shape, dtype=jnp.float32)
    pu = jax.random.normal(k3, shape, dtype=jnp.float32)
    img = jax.random.normal(k4, shape, dtype=jnp.float32)

    out = jax.block_until_ready(objective_x(x, pv, pu, img, lmbda=100.0))
    ref = objective_x_ref(x, pv, pu, img, lmbda=100.0)
    assert jnp.allclose(out, ref, rtol=1e-5, atol=1e-5), (out, ref)

    # Batched path: 4 independent ADMM problems in one pallas_call.
    B = 4
    kb = jax.random.split(jax.random.PRNGKey(1), 4)
    bshape = (B,) + shape
    xb = jax.random.normal(kb[0], bshape, dtype=jnp.float32)
    pvb = jax.random.normal(kb[1], bshape, dtype=jnp.float32)
    pub = jax.random.normal(kb[2], bshape, dtype=jnp.float32)
    imgb = jax.random.normal(kb[3], bshape, dtype=jnp.float32)

    out_b = jax.block_until_ready(
        objective_x_batched(xb, pvb, pub, imgb, lmbda=100.0))
    ref_b = jnp.stack(
        [objective_x_ref(xb[i], pvb[i], pub[i], imgb[i], lmbda=100.0)
         for i in range(B)])
    assert jnp.allclose(out_b, ref_b, rtol=1e-5, atol=1e-5), (out_b, ref_b)

    print("KERNEL_OK")
</pallas_src>

<mosaic_0001>
module attributes {stable_mosaic.version = 11 : i64} {
  func.func @_objective_kernel(%arg0: memref<1x1xf32, #tpu.memory_space<smem>>, %arg1: memref<4x16x128xf32, #tpu.memory_space<vmem>>, %arg2: memref<1x1xf32, #tpu.memory_space<smem>>) attributes {dimension_semantics = [], scalar_prefetch = 0 : i64, scratch_operands = 0 : i64, tpu.core_type = #tpu.core_type<tc>} {
    %c0 = arith.constant 0 : index
    %c0_0 = arith.constant 0 : index
    %0 = memref.load %arg0[%c0, %c0_0] : memref<1x1xf32, #tpu.memory_space<smem>>
    %c0_1 = arith.constant 0 : index
    %c0_2 = arith.constant 0 : index
    %c0_3 = arith.constant 0 : index
    %1 = vector.load %arg1[%c0_1, %c0_2, %c0_3] : memref<4x16x128xf32, #tpu.memory_space<vmem>>, vector<1x16x128xf32>
    %2 = vector.shape_cast %1 : vector<1x16x128xf32> to vector<16x128xf32>
    %c1 = arith.constant 1 : index
    %c0_4 = arith.constant 0 : index
    %c0_5 = arith.constant 0 : index
    %3 = vector.load %arg1[%c1, %c0_4, %c0_5] : memref<4x16x128xf32, #tpu.memory_space<vmem>>, vector<1x16x128xf32>
    %4 = vector.shape_cast %3 : vector<1x16x128xf32> to vector<16x128xf32>
    %c2 = arith.constant 2 : index
    %c0_6 = arith.constant 0 : index
    %c0_7 = arith.constant 0 : index
    %5 = vector.load %arg1[%c2, %c0_6, %c0_7] : memref<4x16x128xf32, #tpu.memory_space<vmem>>, vector<1x16x128xf32>
    %6 = vector.shape_cast %5 : vector<1x16x128xf32> to vector<16x128xf32>
    %c3 = arith.constant 3 : index
    %c0_8 = arith.constant 0 : index
    %c0_9 = arith.constant 0 : index
    %7 = vector.load %arg1[%c3, %c0_8, %c0_9] : memref<4x16x128xf32, #tpu.memory_space<vmem>>, vector<1x16x128xf32>
    %8 = vector.shape_cast %7 : vector<1x16x128xf32> to vector<16x128xf32>
    %9 = vector.broadcast %0 : f32 to vector<16x128xf32>
    %10 = arith.divf %6, %9 : vector<16x128xf32>
    %11 = arith.subf %4, %10 : vector<16x128xf32>
    %12 = arith.subf %2, %8 : vector<16x128xf32>
    %13 = arith.subf %2, %11 : vector<16x128xf32>
    %14 = arith.mulf %12, %12 : vector<16x128xf32>
    %15 = arith.mulf %13, %13 : vector<16x128xf32>
    %16 = vector.broadcast %0 : f32 to vector<16x128xf32>
    %17 = arith.mulf %16, %15 : vector<16x128xf32>
    %18 = arith.addf %14, %17 : vector<16x128xf32>
    %19 = vector.extract_strided_slice %18 {offsets = [0, 0], sizes = [8, 128], strides = [1, 1]} : vector<16x128xf32> to vector<8x128xf32>
    %20 = vector.extract_strided_slice %18 {offsets = [8, 0], sizes = [8, 128], strides = [1, 1]} : vector<16x128xf32> to vector<8x128xf32>
    %21 = arith.addf %19, %20 : vector<8x128xf32>
    %22 = vector.shape_cast %21 : vector<8x128xf32> to vector<1x8x128xf32>
    %cst = arith.constant dense<0.000000e+00> : vector<1xf32>
    %23 = vector.multi_reduction <add>, %22, %cst [1, 2] : vector<1x8x128xf32> to vector<1xf32>
    %24 = vector.shape_cast %23 : vector<1xf32> to vector<1x1x1xf32>
    %25 = vector.extract %24[0, 0, 0] : f32 from vector<1x1x1xf32>
    %cst_10 = arith.constant 5.000000e-01 : f32
    %26 = arith.mulf %cst_10, %25 : f32
    %c0_11 = arith.constant 0 : index
    %c0_12 = arith.constant 0 : index
    %27 = memref.load %arg2[%c0_11, %c0_12] : memref<1x1xf32, #tpu.memory_space<smem>>
    memref.store %26, %arg2[%c0_11, %c0_12] : memref<1x1xf32, #tpu.memory_space<smem>>
    return
  }
}

</mosaic_0001>

<llo_original>
// kernel: tpu_custom_call.1
$region0: #{tpu_custom_call.1}
  #allocation0 [shape = 'u32[]', space=smem, size = 0x4, offset = 0x4, fixed_abs, tag = 'smem constant byte address 0x4 - core index']
  #allocation1 [shape = 'u32[72,128]{1,0:T(1,128)}', space=vmem, size = 0x9000, scoped, tag = 'internal scratch']
  #allocation2 [shape = 'f32[1,1]{1,0:T(1,128)S(6)}', space=smem, size = 0x200, scoped, tag = 'scoped memory for tpu_custom_call.1']
  %s0 = inlined_call_operand.<no memory space> [shape: f32[1,1], index: 0, kind: input, shape index: {}]
  %s1 = inlined_call_operand.hbm [shape: f32[4,16,128], index: 1, kind: input, shape index: {}]
  %s2 = inlined_call_operand.hbm [shape: f32[1,1], index: 2, kind: output, shape index: {}]
  %s3 = sld [smem:[#allocation0]]
  $region22: #{tpu_custom_call.1} parent=0
    _
  %s5 = ssub.s32 1, %s3
  %s6 = scalar_select 0, %s5, %s3
  %7 = sst [smem:[#allocation2]] %s0
  $region1: #{tpu_custom_call.1} parent=0
    #allocation3 [shape = 'u8[32768]{0}', space=vmem, size = 0x8000, scoped, tag = 'input window, operand 1, single buffered']
    #allocation4 [shape = 's32[1]{0}', space=sflag, size = 0x4, scoped, tag = 'scoped memory for tpu_custom_call.1']
    #allocation5 [shape = 's32[1]{0}', space=sflag, size = 0x4, scoped, tag = 'scoped memory for tpu_custom_call.1']
    #allocation6 [shape = 'u8[512]{0}', space=smem, size = 0x200, scoped, tag = 'output window, operand 0, single buffered']
    %8 = vsyncpa [#allocation4], 0
    %9 = vsyncpa [#allocation5], 0
    // Predicated region
    $region2: #{tpu_custom_call.1} parent=1 // pred_check
      _
    $region3: #{tpu_custom_call.1} parent=1 // pred_check_branch
      %11 = sbr.rel (0) target = $region5
    $region4: #{tpu_custom_call.1} parent=1 // pred_region
      _
    $region5: #{tpu_custom_call.1} parent=1 // pred_fallthru
      _
    // Predicated region
    $region6: #{tpu_custom_call.1} parent=1 // pred_check
      _
    $region7: #{tpu_custom_call.1} parent=1 // pred_check_branch
      %13 = sbr.rel (0) target = $region9
    $region8: #{tpu_custom_call.1} parent=1 // pred_region
      %15 = vsyncadd [#allocation4], 0
      %s16 = sshll.u32 %s1, 4
      %s17 = int_to_ptr.hbm [resolvable:$true] %s16
      %s18 = sshll.u32 [#allocation3], 4
      %s19 = int_to_ptr.vmem [resolvable:$true] %s18
      %24 = dma.hbm_to_vmem [thread:$0]  %s17, 1024, %s19, [#allocation4], 128, 128, 8
    $region9: #{tpu_custom_call.1} parent=1 // pred_fallthru
      _
    // Predicated region
    $region10: #{tpu_custom_call.1} parent=1 // pred_check
      _
    $region11: #{tpu_custom_call.1} parent=1 // pred_check_branch
      %26 = sbr.rel (0) target = $region13
    $region12: #{tpu_custom_call.1} parent=1 // pred_region
      %28 = dma.done [#allocation4], 1024
    $region13: #{tpu_custom_call.1} parent=1 // pred_fallthru
      _
    %s29 = sld [smem:[#allocation2]]
    %v30 = vld [vmem:[#allocation3] sm:$0xff]
    %v31 = vld [vmem:[#allocation3 + $0x8] sm:$0xff]
    %s32 = scalar_lea.vmem [#allocation3], 16
    %v33 = vld [vmem:[%s32] sm:$0xff]
    %v34 = vld [vmem:[%s32 + $0x8] sm:$0xff]
    %s35 = scalar_lea.vmem [#allocation3], 32
    %v36 = vld [vmem:[%s35] sm:$0xff]
    %v37 = vld [vmem:[%s35 + $0x8] sm:$0xff]
    %s38 = scalar_lea.vmem [#allocation3], 48
    %v39 = vld [vmem:[%s38] sm:$0xff]
    %v40 = vld [vmem:[%s38 + $0x8] sm:$0xff]
    %v41 = vstv %s29
    %v42 = vrcp.pop %v41
    %v43 = vmul.f32 %v41, %v42
    %v44 = vsub.f32 1.0, %v43
    %v45 = vmul.f32 %v42, %v44
    %v46 = vadd.f32 %v42, %v45
    %vm47 = vweird.f32 %v41
    %vm48 = vweird.f32 %v42
    %vm49 = vmor %vm47, %vm48
    %v50 = vsel %vm49, %v42, %v46
    %v51 = vand.u32 2147483647, %v41
    %vm52 = vcmp.eq.f32.partialorder %v51, 8.507059e+37
    %v53 = vand.u32 %v41, 2147483648
    %v54 = vor.u32 1.1754944e-38, %v53
    %v55 = vsel %vm52, %v54, %v50
    %v56 = vmul.f32 %v36, %v55
    %v57 = vmul.f32 %v37, %v55
    %v58 = vsub.f32 %v33, %v56
    %v59 = vsub.f32 %v34, %v57
    %v60 = vsub.f32 %v30, %v39
    %v61 = vsub.f32 %v31, %v40
    %v62 = vsub.f32 %v30, %v58
    %v63 = vsub.f32 %v31, %v59
    %v64 = vmul.f32 %v60, %v60
    %v65 = vmul.f32 %v61, %v61
    %v66 = vmul.f32 %v62, %v62
    %v67 = vmul.f32 %v63, %v63
    %v68 = vmul.f32 %v41, %v66
    %v69 = vmul.f32 %v41, %v67
    %v70 = vadd.f32 %v64, %v68
    %v71 = vadd.f32 %v65, %v69
    %v72 = vadd.f32 %v70, %v71
    %73 = vadd.xlane.f32.xlu0 %v72
    %v74 = vpop.xlane.xlu0 %73
    %v75 = vrot.slane %v74, 4
    %v76 = vadd.f32 %v74, %v75
    %v77 = vrot.slane %v76, 2
    %v78 = vadd.f32 %v76, %v77
    %v79 = vrot.slane %v78, 1
    %v80 = vadd.f32 %v78, %v79
    %s81 = vtos %v80
    %s82 = smul.f32 %s81, 0.5
    %s83 = scalar_lea.smem [#allocation6], 0
    %84 = sst [smem:[%s83]] %s82
    // Predicated region
    $region14: #{tpu_custom_call.1} parent=1 // pred_check
      _
    $region15: #{tpu_custom_call.1} parent=1 // pred_check_branch
      %86 = sbr.rel (0) target = $region17
    $region16: #{tpu_custom_call.1} parent=1 // pred_region
      %88 = vsyncadd [#allocation5], 0
      %s90 = sshll.u32 %s2, 4
      %s91 = int_to_ptr.hbm [resolvable:$true] %s90
      %93 = dma.smem_to_hbm [#allocation6], 16, %s91, [#allocation5]
    $region17: #{tpu_custom_call.1} parent=1 // pred_fallthru
      _
    // Predicated region
    $region18: #{tpu_custom_call.1} parent=1 // pred_check
      _
    $region19: #{tpu_custom_call.1} parent=1 // pred_check_branch
      %95 = sbr.rel (0) target = $region21
    $region20: #{tpu_custom_call.1} parent=1 // pred_region
      %97 = dma.done [#allocation5], 16
    $region21: #{tpu_custom_call.1} parent=1 // pred_fallthru
      _
    %98 = sfence
    %99 = vsyncpa [#allocation4], 1
    %100 = vsyncpa [#allocation5], 1

</llo_original>
